<compile_context>
chip_gen: v6e
topology: v6e:2x2x1
jax: 0.10.0
libtpu: 0.0.40
codegen_flags: <defaults>
</compile_context>

<pallas_src>
import numpy as np
import jax
import jax.numpy as jnp
from jax.experimental import pallas as pl
from jax.experimental.pallas import tpu as pltpu


# ----------------------------------------------------------------------------
# Hardware query (cached) — one codepath correct on v5e / v6e / v7x
# ----------------------------------------------------------------------------
_VMEM_CAP = None


def _vmem_capacity_bytes():
    global _VMEM_CAP
    if _VMEM_CAP is None:
        try:
            _VMEM_CAP = int(pltpu.get_tpu_info().vmem_capacity_bytes)
        except Exception:
            _VMEM_CAP = 64 * 1024 * 1024      # conservative (v7x per-TC VMEM)
    return _VMEM_CAP


def _vmem_limit_bytes():
    # leave headroom; 64 MiB on v5e/v6e (128 MiB physical), 32 MiB on v7x
    return int(min(_vmem_capacity_bytes() // 2, 64 * 1024 * 1024))


def _choose_row_tile(n_rows, n_classes, itemsize):
    """Row tile sized against the current generation's VMEM."""
    if _vmem_capacity_bytes() >= 96 * 1024 * 1024:     # v5e / v6e
        target_bytes, row_cap = 8 * 1024 * 1024, 2048
    else:                                              # v7x (64 MiB per TC)
        target_bytes, row_cap = 4 * 1024 * 1024, 1024

    sub = 16 if itemsize == 2 else 8                   # bf16 packs 2 rows/sublane
    rows = max(sub, target_bytes // max(1, n_classes * itemsize))
    rows = min(rows, row_cap)
    rows = max(sub, (rows // sub) * sub)
    n_pad = ((n_rows + sub - 1) // sub) * sub
    rows = int(min(rows, max(sub, n_pad)))

    # v7x has 2 TensorCores: make sure the "parallel" grid axis has >= 2 steps
    # when the problem is big enough (a 2nd step costs ~0.35us on 1-TC chips).
    if pl.cdiv(n_rows, rows) < 2 and n_rows > 2 * sub:
        half = (n_rows + 1) // 2
        rows = int(max(sub, ((half + sub - 1) // sub) * sub))
    return rows


# ----------------------------------------------------------------------------
# Pallas kernel: per-tile partial sum of  loss_n = logsumexp(x_n) - x_n[t_n]
# ----------------------------------------------------------------------------
def _make_ce_tilesum_kernel(n_rows, row_tile):
    """Kernel closure over static row count / row tile."""

    def kernel(logits_ref, tgt_ref, out_ref):
        i = pl.program_id(0)
        x = logits_ref[...].astype(jnp.float32)                       # (TN, C)

        # Row-validity mask derived in-kernel (no HBM `valid` array); also
        # masks the partially out-of-bounds last tile (unspecified data).
        row = i * row_tile + jax.lax.broadcasted_iota(
            jnp.int32, (row_tile, 1), 0)
        valid = row < n_rows                                          # (TN, 1)

        # Numerically stable logsumexp over the class (lane) axis.
        m = jnp.max(x, axis=-1, keepdims=True)                        # (TN, 1)
        xm = x - m                                                    # shared with gather
        sumexp = jnp.sum(jnp.exp(xm), axis=-1, keepdims=True)         # (TN, 1)

        # Target-logit gather (relative to m) via masked lane-reduce; shares
        # the xm intermediate so m never needs to be re-added/subtracted.
        cls = jax.lax.broadcasted_iota(jnp.int32, x.shape, 1)         # (TN, C)
        tgt_xm = jnp.sum(jnp.where(cls == tgt_ref[...], xm, 0.0),
                         axis=-1, keepdims=True)                      # (TN, 1)

        # Per-row loss = logsumexp - x[t] = log(sumexp) - (x[t] - m).
        # Keep a TRUE select (not multiply-by-mask) and apply it BEFORE the
        # tile reduction so NaN/Inf garbage in invalid rows is dropped.
        loss = jnp.where(valid, jnp.log(sumexp) - tgt_xm, 0.0)        # (TN, 1)

        # Per-tile partial sum written as a single aligned (8, 1) block:
        # selector matmul puts sum(loss) in sublane 0 and exact zeros in the
        # other 7 sublanes (one tiny MXU op; avoids TN/8 masked stores and any
        # rank-0 reduce / dynamic broadcast).
        sel = (jax.lax.broadcasted_iota(jnp.int32, (8, row_tile), 0) == 0
               ).astype(jnp.float32)                                  # row 0 = ones
        out_ref[...] = jnp.dot(sel, loss,
                               preferred_element_type=jnp.float32)    # (8, 1)

    return kernel


@jax.jit
def _ce_sum_pallas(logits, targets):
    """sum-reduction CrossEntropyLoss(logits (N,C), targets (N,)) via Pallas."""
    logits = jnp.asarray(logits)
    targets = jnp.asarray(targets, jnp.int32)
    n, c = logits.shape
    itemsize = jnp.dtype(logits.dtype).itemsize

    tn = _choose_row_tile(n, c, itemsize)
    num_tiles = pl.cdiv(n, tn)

    per_tile = pl.pallas_call(
        _make_ce_tilesum_kernel(n, tn),
        out_shape=jax.ShapeDtypeStruct((num_tiles * 8, 1), jnp.float32),
        grid_spec=pltpu.PrefetchScalarGridSpec(
            num_scalar_prefetch=0,
            grid=(num_tiles,),
            in_specs=[
                pl.BlockSpec((tn, c), lambda i: (i, 0)),   # full class dim
                pl.BlockSpec((tn, 1), lambda i: (i, 0)),   # targets column
            ],
            out_specs=pl.BlockSpec((8, 1), lambda i: (i, 0)),
        ),
        compiler_params=pltpu.CompilerParams(
            dimension_semantics=("parallel",),             # both TCs on v7x
            vmem_limit_bytes=_vmem_limit_bytes(),
        ),
    )(logits, targets[:, None])

    # tiny final reduction (num_tiles*8 elements, exact zeros off sublane 0)
    return jnp.sum(per_tile)


# ----------------------------------------------------------------------------
# XLA fallback for small / narrow clusters (adaptive-softmax tails)
# ----------------------------------------------------------------------------
_PALLAS_MIN_CLASSES = 128        # below this, lane occupancy < 100% anyway
_PALLAS_MIN_BYTES = 128 * 1024   # below this, dispatch overhead dominates


@jax.jit
def _ce_sum_xla(logits, targets):
    logits = jnp.asarray(logits, jnp.float32)
    targets = jnp.asarray(targets, jnp.int32)
    lse = jax.scipy.special.logsumexp(logits, axis=-1)
    tgt = jnp.take_along_axis(logits, targets[:, None], axis=-1)[:, 0]
    return jnp.sum(lse - tgt)


def ce_sum(logits, targets):
    logits = jnp.asarray(logits)
    targets = jnp.asarray(targets, jnp.int32)
    n, c = logits.shape
    if c < _PALLAS_MIN_CLASSES or n * c * logits.dtype.itemsize < _PALLAS_MIN_BYTES:
        return _ce_sum_xla(logits, targets)
    return _ce_sum_pallas(logits, targets)


# ----------------------------------------------------------------------------
# AdaptiveLoss module (forward semantics of the PyTorch module)
# ----------------------------------------------------------------------------
class AdaptiveLoss:
    def __init__(self, cutoff):
        self.cutoff = list(cutoff)

    def remap_target(self, target):
        # data-dependent glue with dynamic shapes, done host-side in numpy
        # (mirrors the PyTorch .data path)
        # TODO(synk): cache per target batch / move to a jitted segment pipeline
        # if this host-side work ever shows up in the profile.
        target = np.asarray(target).copy()
        new_target = [target.copy()]
        for i in range(len(self.cutoff) - 1):
            mask = (target >= self.cutoff[i]) & (target < self.cutoff[i + 1])
            new_target[0][mask] = self.cutoff[0] + i
            if mask.sum() > 0:
                new_target.append(target[mask] - self.cutoff[i])
            else:
                new_target.append(None)
        return new_target

    def __call__(self, inputs, target):
        batch_size = inputs[0].shape[0]
        targets = self.remap_target(target)
        output = jnp.float32(0.0)
        for i in range(len(inputs)):
            # (the PyTorch code's `if i is not None` is always true; a None tail
            #  target would crash there too, so we require non-empty clusters)
            assert targets[i] is not None
            # strict upper bound (a target == C would silently corrupt the loss)
            assert targets[i].min() >= 0 and targets[i].max() < inputs[i].shape[1]
            output = output + ce_sum(inputs[i], targets[i])
        output = output / batch_size
        return output


# pure-JAX reference for correctness checking
def _adaptive_loss_ref(cutoff, inputs, target):
    mod = AdaptiveLoss(cutoff)
    targets = mod.remap_target(target)
    out = jnp.float32(0.0)
    for i in range(len(inputs)):
        out = out + _ce_sum_xla(jnp.asarray(inputs[i]),
                                jnp.asarray(targets[i], jnp.int32))
    return out / inputs[0].shape[0]


if __name__ == "__main__":
    key = jax.random.PRNGKey(0)
    k1, k2, k3, k4 = jax.random.split(key, 4)

    # ---- direct Pallas-kernel check (forces the Pallas path) ----------------
    # N not a multiple of the tile -> exercises the in-kernel validity mask.
    n, c = 300, 512
    logits = jax.random.normal(k1, (n, c), jnp.float32)
    tgts = jax.random.randint(k2, (n,), 0, c, dtype=jnp.int32)
    got = jax.block_until_ready(_ce_sum_pallas(logits, tgts))
    want = jax.block_until_ready(_ce_sum_xla(logits, tgts))
    np.testing.assert_allclose(float(got), float(want), rtol=1e-5, atol=1e-4)

    # ---- full AdaptiveLoss module check -------------------------------------
    cutoff = [200, 232, 264]       # head C = 200 + 2 cluster slots = 202 (Pallas)
    batch = 512                    # tail clusters have C = 32 (XLA fallback)

    target = np.asarray(
        jax.random.randint(k3, (batch,), 0, cutoff[-1], dtype=jnp.int32)).copy()
    # guarantee every cluster is non-empty (deterministic)
    target[0] = 5
    target[1] = cutoff[0] + 5
    target[2] = cutoff[1] + 7

    loss_mod = AdaptiveLoss(cutoff)
    remapped = loss_mod.remap_target(target)

    head_classes = cutoff[0] + len(cutoff) - 1
    keys = jax.random.split(k4, len(cutoff))
    inputs = [jax.random.normal(keys[0], (batch, head_classes), jnp.float32)]
    for i in range(1, len(cutoff)):
        n_i = int(remapped[i].shape[0])
        c_i = cutoff[i] - cutoff[i - 1]
        inputs.append(jax.random.normal(keys[i], (n_i, c_i), jnp.float32))

    out = jax.block_until_ready(loss_mod(inputs, target))
    ref = jax.block_until_ready(_adaptive_loss_ref(cutoff, inputs, target))

    assert np.isfinite(float(out))
    np.testing.assert_allclose(float(out), float(ref), rtol=1e-5, atol=1e-5)

    print("KERNEL_OK")
</pallas_src>

<mosaic_0001>
module attributes {stable_mosaic.version = 11 : i64} {
  func.func @kernel(%arg0: i32, %arg1: memref<152x512xf32, #tpu.memory_space<vmem>>, %arg2: memref<152x1xi32, #tpu.memory_space<vmem>>, %arg3: memref<8x1xf32, #tpu.memory_space<vmem>>) attributes {dimension_semantics = [#tpu.dimension_semantics<parallel>], iteration_bounds = array<i64: 2>, scalar_prefetch = 0 : i64, scratch_operands = 0 : i64, tpu.core_type = #tpu.core_type<tc>, window_params = [{transform_indices = @transform_0, window_bounds = array<i64: 152, 512>}, {transform_indices = @transform_1, window_bounds = array<i64: 152, 1>}, {transform_indices = @transform_2, window_bounds = array<i64: 8, 1>}]} {
    %c0 = arith.constant 0 : index
    %c0_0 = arith.constant 0 : index
    %0 = vector.load %arg1[%c0, %c0_0] : memref<152x512xf32, #tpu.memory_space<vmem>>, vector<152x512xf32>
    %c152_i32 = arith.constant 152 : i32
    %1 = arith.muli %arg0, %c152_i32 : i32
    %2 = tpu.iota {dimensions = array<i32: 0>} : vector<152x1xi32>
    %3 = vector.broadcast %1 : i32 to vector<152x1xi32>
    %4 = arith.addi %3, %2 : vector<152x1xi32>
    %c300_i32 = arith.constant 300 : i32
    %5 = vector.broadcast %c300_i32 : i32 to vector<152x1xi32>
    %6 = arith.cmpi slt, %4, %5 : vector<152x1xi32>
    %cst = arith.constant dense<0xFF800000> : vector<152xf32>
    %7 = vector.multi_reduction <maximumf>, %0, %cst [1] : vector<152x512xf32> to vector<152xf32>
    %8 = vector.shape_cast %7 : vector<152xf32> to vector<152x1xf32>
    %9 = vector.broadcast %8 : vector<152x1xf32> to vector<152x512xf32>
    %10 = arith.subf %0, %9 : vector<152x512xf32>
    %11 = math.exp %10 : vector<152x512xf32>
    %cst_1 = arith.constant dense<0.000000e+00> : vector<152xf32>
    %12 = vector.multi_reduction <add>, %11, %cst_1 [1] : vector<152x512xf32> to vector<152xf32>
    %13 = vector.shape_cast %12 : vector<152xf32> to vector<152x1xf32>
    %14 = tpu.iota {dimensions = array<i32: 1>} : vector<152x512xi32>
    %c0_2 = arith.constant 0 : index
    %c0_3 = arith.constant 0 : index
    %15 = vector.load %arg2[%c0_2, %c0_3] : memref<152x1xi32, #tpu.memory_space<vmem>>, vector<152x1xi32>
    %16 = vector.broadcast %15 : vector<152x1xi32> to vector<152x512xi32>
    %17 = arith.cmpi eq, %14, %16 : vector<152x512xi32>
    %cst_4 = arith.constant 0.000000e+00 : f32
    %18 = vector.broadcast %cst_4 : f32 to vector<152x512xf32>
    %19 = arith.select %17, %10, %18 : vector<152x512xi1>, vector<152x512xf32>
    %cst_5 = arith.constant dense<0.000000e+00> : vector<152xf32>
    %20 = vector.multi_reduction <add>, %19, %cst_5 [1] : vector<152x512xf32> to vector<152xf32>
    %21 = vector.shape_cast %20 : vector<152xf32> to vector<152x1xf32>
    %22 = math.log %13 : vector<152x1xf32>
    %23 = arith.subf %22, %21 : vector<152x1xf32>
    %cst_6 = arith.constant 0.000000e+00 : f32
    %24 = vector.broadcast %cst_6 : f32 to vector<152x1xf32>
    %25 = arith.select %6, %23, %24 : vector<152x1xi1>, vector<152x1xf32>
    %26 = tpu.iota {dimensions = array<i32: 0>} : vector<8x152xi32>
    %c0_i32 = arith.constant 0 : i32
    %27 = vector.broadcast %c0_i32 : i32 to vector<8x152xi32>
    %28 = arith.cmpi eq, %26, %27 : vector<8x152xi32>
    %29 = arith.extui %28 : vector<8x152xi1> to vector<8x152xi32>
    %30 = arith.sitofp %29 : vector<8x152xi32> to vector<8x152xf32>
    %cst_7 = arith.constant dense<0.000000e+00> : vector<8x1xf32>
    %31 = tpu.matmul %30, %25, %cst_7 {dimension_numbers = #tpu.dot_dimension_numbers<[1], [0], [0], [1], [0, 0, 1, 1], [], []>} : vector<8x152xf32>, vector<152x1xf32>, vector<8x1xf32> -> vector<8x1xf32>
    %c0_8 = arith.constant 0 : index
    %c0_9 = arith.constant 0 : index
    %32 = vector.load %arg3[%c0_8, %c0_9] : memref<8x1xf32, #tpu.memory_space<vmem>>, vector<8x1xf32>
    tpu.vector_store %arg3[%c0_8, %c0_9], %31 {strides = array<i32>} : memref<8x1xf32, #tpu.memory_space<vmem>>, vector<8x1xf32>,
    return
  }
  func.func @transform_0(%arg0: i32) -> (i32, i32) {
    %c0_i32 = arith.constant 0 : i32
    %c0_i32_0 = arith.constant 0 : i32
    return %arg0, %c0_i32 : i32, i32
  }
  func.func @transform_1(%arg0: i32) -> (i32, i32) {
    %c0_i32 = arith.constant 0 : i32
    %c0_i32_0 = arith.constant 0 : i32
    return %arg0, %c0_i32 : i32, i32
  }
  func.func @transform_2(%arg0: i32) -> (i32, i32) {
    %c0_i32 = arith.constant 0 : i32
    %c0_i32_0 = arith.constant 0 : i32
    return %arg0, %c0_i32 : i32, i32
  }
}

</mosaic_0001>

<llo_original>
// kernel: _ce_sum_pallas.1
$region0: #{_ce_sum_pallas.1}
  #allocation0 [shape = 'u32[]', space=smem, size = 0x4, offset = 0x4, fixed_abs, tag = 'smem constant byte address 0x4 - core index']
  #allocation1 [shape = 'u32[144,128]{1,0:T(1,128)}', space=vmem, size = 0x12000, scoped, tag = 'internal scratch']
  %s0 = inlined_call_operand.hbm [shape: f32[300,512], index: 0, kind: input, shape index: {}]
  %s1 = inlined_call_operand.vmem [shape: s32[300,1], index: 1, kind: input, shape index: {}]
  %s2 = inlined_call_operand.vmem [shape: f32[16,1], index: 2, kind: output, shape index: {}]
  %s3 = sld [smem:[#allocation0]]
  $region45: #{_ce_sum_pallas.1} parent=0
    _
  %s5 = ssub.s32 1, %s3
  %s6 = scalar_select 0, %s5, %s3
  $region1: #{_ce_sum_pallas.1} parent=0
    #allocation2 [shape = 'u8[622592]{0}', space=vmem, size = 0x98000, scoped, tag = 'input window, operand 0']
    #allocation3 [shape = 's32[2]{0}', space=sflag, size = 0x8, scoped, tag = 'scoped memory for _ce_sum_pallas.1']
    %7 = vsyncpa [#allocation3], 0
    %s8 = scalar_lea.sflag [#allocation3], 1
    %9 = vsyncpa %s8, 0
    loop: start=0, step=1, limit=4
    $region2: #{_ce_sum_pallas.1} parent=1 // loop_pre_header
      _
    $region3: #{_ce_sum_pallas.1} parent=1 // loop_header
      %s11 = sphi 0, %s15
      %p12 = scmp.ge.s32.totalorder %s11, 4
      %s21 = sphi 0, %s23
      %s24 = sphi 0, %s21
      %s25 = sphi 0, %s24
      %s41 = sphi 0, %s25
      %s47 = sphi 0, %s49
      %s50 = sphi 0, %s47
      %s51 = sphi 0, %s50
      %s67 = sphi 0, %s51
      %s73 = sphi 0, %s75
      %s76 = sphi 0, %s73
      %s77 = sphi 0, %s76
      %s93 = sphi 0, %s77
    $region4: #{_ce_sum_pallas.1} parent=1 // loop_header_branch
      %14 = sbr.rel (%p12) target = $region8
    $region5: #{_ce_sum_pallas.1} parent=1 // loop_body
      %s16 = ssub.s32 %s11, 1
      %s17 = ssub.s32 %s11, 2
      %s18 = sadd.s32 %s11, 1
      %s19 = ssub.s32 %s11, %s18
      %p20 = scmp.eq.s32.totalorder %s19, 0
      %s22 = sadd.s32 %s21, 1
      %s23 = scalar_select %p20, %s21, %s22
      %p26 = pneg %p20
      %p27 = scmp.eq.s32.totalorder %s11, 1
      %p28 = por %p26, %p27
      %p29 = scmp.ne.s32.totalorder %s21, %s24
      %p30 = scmp.eq.s32.totalorder %s11, 0
      %p31 = por %p29, %p30
      %p32 = scmp.ne.s32.totalorder %s21, %s24
      %p33 = scmp.eq.s32.totalorder %s16, 1
      %p34 = por %p32, %p33
      %p35 = scmp.ne.s32.totalorder %s24, %s25
      %p36 = scmp.eq.s32.totalorder %s16, 0
      %p37 = por %p35, %p36
      %p38 = scmp.ne.s32.totalorder %s24, %s25
      %p39 = scmp.eq.s32.totalorder %s17, 1
      %p40 = por %p38, %p39
      %p42 = scmp.ne.s32.totalorder %s25, %s41
      %p43 = scmp.eq.s32.totalorder %s17, 0
      %p44 = por %p42, %p43
      %s45 = ssub.s32 %s11, %s18
      %p46 = scmp.eq.s32.totalorder %s45, 0
      %s48 = sadd.s32 %s47, 1
      %s49 = scalar_select %p46, %s47, %s48
      %p52 = pneg %p46
      %p53 = scmp.eq.s32.totalorder %s11, 1
      %p54 = por %p52, %p53
      %p55 = scmp.ne.s32.totalorder %s47, %s50
      %p56 = scmp.eq.s32.totalorder %s11, 0
      %p57 = por %p55, %p56
      %p58 = scmp.ne.s32.totalorder %s47, %s50
      %p59 = scmp.eq.s32.totalorder %s16, 1
      %p60 = por %p58, %p59
      %p61 = scmp.ne.s32.totalorder %s50, %s51
      %p62 = scmp.eq.s32.totalorder %s16, 0
      %p63 = por %p61, %p62
      %p64 = scmp.ne.s32.totalorder %s50, %s51
      %p65 = scmp.eq.s32.totalorder %s17, 1
      %p66 = por %p64, %p65
      %p68 = scmp.ne.s32.totalorder %s51, %s67
      %p69 = scmp.eq.s32.totalorder %s17, 0
      %p70 = por %p68, %p69
      %s71 = ssub.s32 %s11, %s18
      %p72 = scmp.eq.s32.totalorder %s71, 0
      %s74 = sadd.s32 %s73, 1
      %s75 = scalar_select %p72, %s73, %s74
      %p78 = pneg %p72
      %p79 = scmp.eq.s32.totalorder %s11, 1
      %p80 = por %p78, %p79
      %p81 = scmp.ne.s32.totalorder %s73, %s76
      %p82 = scmp.eq.s32.totalorder %s11, 0
      %p83 = por %p81, %p82
      %p84 = scmp.ne.s32.totalorder %s73, %s76
      %p85 = scmp.eq.s32.totalorder %s16, 1
      %p86 = por %p84, %p85
      %p87 = scmp.ne.s32.totalorder %s76, %s77
      %p88 = scmp.eq.s32.totalorder %s16, 0
      %p89 = por %p87, %p88
      %p90 = scmp.ne.s32.totalorder %s76, %s77
      %p91 = scmp.eq.s32.totalorder %s17, 1
      %p92 = por %p90, %p91
      %p94 = scmp.ne.s32.totalorder %s77, %s93
      %p95 = scmp.eq.s32.totalorder %s17, 0
      %p96 = por %p94, %p95
      %p97 = scmp.le.s32.totalorder 1, %s11
      %p98 = scmp.lt.s32.totalorder %s11, 3
      %p99 = pnand %p97, %p98
      %p100 = pneg %p99
      // Predicated region
      $region9: #{_ce_sum_pallas.1} parent=5 // pred_check
        _
      $region10: #{_ce_sum_pallas.1} parent=5 // pred_check_branch
        %102 = sbr.rel (%p99) target = $region12
      $region11: #{_ce_sum_pallas.1} parent=5 // pred_region
        %s103 = ssub.s32 %s11, 1
      $region12: #{_ce_sum_pallas.1} parent=5 // pred_fallthru
        _
      %p104 = scmp.lt.s32.totalorder %s11, 2
      // Predicated region
      $region13: #{_ce_sum_pallas.1} parent=5 // pred_check
        %p105 = pneg %p104
      $region14: #{_ce_sum_pallas.1} parent=5 // pred_check_branch
        %107 = sbr.rel (%p105) target = $region16
      $region15: #{_ce_sum_pallas.1} parent=5 // pred_region
        // Predicated region
        $region17: #{_ce_sum_pallas.1} parent=15 // pred_check
          %p108 = pneg %p31
        $region18: #{_ce_sum_pallas.1} parent=15 // pred_check_branch
          %110 = sbr.rel (%p108) target = $region20
        $region19: #{_ce_sum_pallas.1} parent=15 // pred_region
          %s111 = sand.u32 %s21, 1
          %s112 = scalar_lea.sflag [#allocation3], %s111
          %s113 = sand.u32 %s21, 1
          %s114 = smul.addr %s113, 608
          %s115 = scalar_lea.vmem [#allocation2], %s114
          %s116 = smul.u32 19, %s11
          %s118 = ssub.s32 9728, 9728
          %119 = vsyncadd %s112, %s118
          %s120 = smul.addr %s116, 4
          %s121 = smul.addr %s120, 128
          %s122 = scalar_lea.hbm %s0, %s121
          %s123 = sshll.u32 %s115, 4
          %s124 = int_to_ptr.vmem [resolvable:$true] %s123
          %129 = dma.hbm_to_vmem [thread:$0]  %s122, 9728, %s124, %s112, 512, 512, 32
        $region20: #{_ce_sum_pallas.1} parent=15 // pred_fallthru
          _
        // Predicated region
        $region21: #{_ce_sum_pallas.1} parent=15 // pred_check
          %p130 = pneg %p57
        $region22: #{_ce_sum_pallas.1} parent=15 // pred_check_branch
          %132 = sbr.rel (%p130) target = $region24
        $region23: #{_ce_sum_pallas.1} parent=15 // pred_region
          %s133 = smul.u32 19, %s11
          %p134 = scmp.lt.s32.totalorder %s133, 37
          %s135 = scalar_select %p134, %s133, 37
          %s136 = smul.addr %s135, 8
          %s137 = scalar_lea.vmem %s1, %s136
          %s138 = smul.u32 19, %s11
        $region24: #{_ce_sum_pallas.1} parent=15 // pred_fallthru
          _
      $region16: #{_ce_sum_pallas.1} parent=5 // pred_fallthru
        _
      %p139 = scmp.le.s32.totalorder 1, %s11
      %p140 = scmp.lt.s32.totalorder %s11, 3
      %p141 = pnand %p139, %p140
      %p142 = pneg %p141
      // Predicated region
      $region25: #{_ce_sum_pallas.1} parent=5 // pred_check
        _
      $region26: #{_ce_sum_pallas.1} parent=5 // pred_check_branch
        %144 = sbr.rel (%p141) target = $region28
      $region27: #{_ce_sum_pallas.1} parent=5 // pred_region
        %s145 = ssub.s32 %s11, 1
        %s146 = sand.u32 %s24, 1
        %s147 = scalar_lea.sflag [#allocation3], %s146
        %s148 = sand.u32 %s24, 1
        %s149 = smul.addr %s148, 608
        %s150 = scalar_lea.vmem [#allocation2], %s149
        // Predicated region
        $region29: #{_ce_sum_pallas.1} parent=27 // pred_check
          %p151 = pneg %p37
        $region30: #{_ce_sum_pallas.1} parent=27 // pred_check_branch
          %153 = sbr.rel (%p151) target = $region32
        $region31: #{_ce_sum_pallas.1} parent=27 // pred_region
          %154 = dma.done %s147, 9728
        $region32: #{_ce_sum_pallas.1} parent=27 // pred_fallthru
          _
        %s155 = sand.u32 %s24, 1
        %s156 = scalar_lea.sflag [#allocation3], %s155
        %s157 = sand.u32 %s24, 1
        %s158 = smul.addr %s157, 608
        %s159 = scalar_lea.vmem [#allocation2], %s158
        %p160 = pneg %p37
        %p161 = pneg %p34
        %s162 = smul.u32 19, %s16
        %p163 = scmp.lt.s32.totalorder %s162, 37
        %s164 = scalar_select %p163, %s162, 37
        %s165 = smul.addr %s164, 8
        %s166 = scalar_lea.vmem %s1, %s165
        %p167 = pneg %p63
        %p168 = pneg %p60
        %p169 = pneg %p89
        %p170 = pneg %p86
        %p171 = scmp.lt.s32.totalorder %s16, 1
        %s172 = scalar_select %p171, %s16, 1
        %s173 = smul.addr %s172, 8
        %s174 = scalar_lea.vmem %s2, %s173
        %s175 = smul.u32 19, %s16
        %s176 = smul.u32 19, %s16
        %p177 = scmp.lt.s32.totalorder %s176, 37
        %s178 = scalar_select %p177, %s176, 37
        %s179 = smul.addr %s178, 8
        %s180 = scalar_lea.vmem %s1, %s179
        %s181 = smul.u32 19, %s16
        %p182 = scmp.lt.s32.totalorder %s16, 1
        %s183 = scalar_select %p182, %s16, 1
        %s184 = smul.addr %s183, 8
        %s185 = scalar_lea.vmem %s2, %s184
        %v186 = vld [vmem:[%s150] sm:$0xff]
        %v187 = vld [vmem:[%s150 + $0x8] sm:$0xff]
        %v188 = vld [vmem:[%s150 + $0x10] sm:$0xff]
        %v189 = vld [vmem:[%s150 + $0x18] sm:$0xff]
        %v190 = vld [vmem:[%s150 + $0x20] sm:$0xff]
        %v191 = vld [vmem:[%s150 + $0x28] sm:$0xff]
        %v192 = vld [vmem:[%s150 + $0x30] sm:$0xff]
        %v193 = vld [vmem:[%s150 + $0x38] sm:$0xff]
        %v194 = vld [vmem:[%s150 + $0x40] sm:$0xff]
        %v195 = vld [vmem:[%s150 + $0x48] sm:$0xff]
        %v196 = vld [vmem:[%s150 + $0x50] sm:$0xff]
        %v197 = vld [vmem:[%s150 + $0x58] sm:$0xff]
        %v198 = vld [vmem:[%s150 + $0x60] sm:$0xff]
        %v199 = vld [vmem:[%s150 + $0x68] sm:$0xff]
        %v200 = vld [vmem:[%s150 + $0x70] sm:$0xff]
        %v201 = vld [vmem:[%s150 + $0x78] sm:$0xff]
        %v202 = vld [vmem:[%s150 + $0x80] sm:$0xff]
        %v203 = vld [vmem:[%s150 + $0x88] sm:$0xff]
        %v204 = vld [vmem:[%s150 + $0x90] sm:$0xff]
        %v205 = vld [vmem:[%s150 + $0x98] sm:$0xff]
        %v206 = vld [vmem:[%s150 + $0xa0] sm:$0xff]
        %v207 = vld [vmem:[%s150 + $0xa8] sm:$0xff]
        %v208 = vld [vmem:[%s150 + $0xb0] sm:$0xff]
        %v209 = vld [vmem:[%s150 + $0xb8] sm:$0xff]
        %v210 = vld [vmem:[%s150 + $0xc0] sm:$0xff]
        %v211 = vld [vmem:[%s150 + $0xc8] sm:$0xff]
        %v212 = vld [vmem:[%s150 + $0xd0] sm:$0xff]
        %v213 = vld [vmem:[%s150 + $0xd8] sm:$0xff]
        %v214 = vld [vmem:[%s150 + $0xe0] sm:$0xff]
        %v215 = vld [vmem:[%s150 + $0xe8] sm:$0xff]
        %v216 = vld [vmem:[%s150 + $0xf0] sm:$0xff]
        %v217 = vld [vmem:[%s150 + $0xf8] sm:$0xff]
        %v218 = vld [vmem:[%s150 + $0x100] sm:$0xff]
        %v219 = vld [vmem:[%s150 + $0x108] sm:$0xff]
        %v220 = vld [vmem:[%s150 + $0x110] sm:$0xff]
        %v221 = vld [vmem:[%s150 + $0x118] sm:$0xff]
        %v222 = vld [vmem:[%s150 + $0x120] sm:$0xff]
        %v223 = vld [vmem:[%s150 + $0x128] sm:$0xff]
        %v224 = vld [vmem:[%s150 + $0x130] sm:$0xff]
        %v225 = vld [vmem:[%s150 + $0x138] sm:$0xff]
        %v226 = vld [vmem:[%s150 + $0x140] sm:$0xff]
        %v227 = vld [vmem:[%s150 + $0x148] sm:$0xff]
        %v228 = vld [vmem:[%s150 + $0x150] sm:$0xff]
        %v229 = vld [vmem:[%s150 + $0x158] sm:$0xff]
        %v230 = vld [vmem:[%s150 + $0x160] sm:$0xff]
        %v231 = vld [vmem:[%s150 + $0x168] sm:$0xff]
        %v232 = vld [vmem:[%s150 + $0x170] sm:$0xff]
        %v233 = vld [vmem:[%s150 + $0x178] sm:$0xff]
        %v234 = vld [vmem:[%s150 + $0x180] sm:$0xff]
        %v235 = vld [vmem:[%s150 + $0x188] sm:$0xff]
        %v236 = vld [vmem:[%s150 + $0x190] sm:$0xff]
        %v237 = vld [vmem:[%s150 + $0x198] sm:$0xff]
        %v238 = vld [vmem:[%s150 + $0x1a0] sm:$0xff]
        %v239 = vld [vmem:[%s150 + $0x1a8] sm:$0xff]
        %v240 = vld [vmem:[%s150 + $0x1b0] sm:$0xff]
        %v241 = vld [vmem:[%s150 + $0x1b8] sm:$0xff]
        %v242 = vld [vmem:[%s150 + $0x1c0] sm:$0xff]
        %v243 = vld [vmem:[%s150 + $0x1c8] sm:$0xff]
        %v244 = vld [vmem:[%s150 + $0x1d0] sm:$0xff]
        %v245 = vld [vmem:[%s150 + $0x1d8] sm:$0xff]
        %v246 = vld [vmem:[%s150 + $0x1e0] sm:$0xff]
        %v247 = vld [vmem:[%s150 + $0x1e8] sm:$0xff]
        %v248 = vld [vmem:[%s150 + $0x1f0] sm:$0xff]
        %v249 = vld [vmem:[%s150 + $0x1f8] sm:$0xff]
        %v250 = vld [vmem:[%s150 + $0x200] sm:$0xff]
        %v251 = vld [vmem:[%s150 + $0x208] sm:$0xff]
        %v252 = vld [vmem:[%s150 + $0x210] sm:$0xff]
        %v253 = vld [vmem:[%s150 + $0x218] sm:$0xff]
        %v254 = vld [vmem:[%s150 + $0x220] sm:$0xff]
        %v255 = vld [vmem:[%s150 + $0x228] sm:$0xff]
        %v256 = vld [vmem:[%s150 + $0x230] sm:$0xff]
        %v257 = vld [vmem:[%s150 + $0x238] sm:$0xff]
        %v258 = vld [vmem:[%s150 + $0x240] sm:$0xff]
        %v259 = vld [vmem:[%s150 + $0x248] sm:$0xff]
        %v260 = vld [vmem:[%s150 + $0x250] sm:$0xff]
        %v261 = vld [vmem:[%s150 + $0x258] sm:$0xff]
        %s262 = smul.u32 %s16, 152
        %v263 = vlaneseq
        %v264 = vshrl.u32 %v263, 7
        %v265 = vadd.s32 %v264, 8
        %v266 = vadd.s32 %v264, 16
        %v267 = vadd.s32 %v264, 24
        %v268 = vadd.s32 %v264, 32
        %v269 = vadd.s32 %v264, 40
        %v270 = vadd.s32 %v264, 48
        %v271 = vadd.s32 %v264, 56
        %v272 = vadd.s32 %v264, 64
        %v273 = vadd.s32 %v264, 72
        %v274 = vadd.s32 %v264, 80
        %v275 = vadd.s32 %v264, 88
        %v276 = vadd.s32 %v264, 96
        %v277 = vadd.s32 %v264, 104
        %v278 = vadd.s32 %v264, 112
        %v279 = vadd.s32 %v264, 120
        %v280 = vadd.s32 %v264, 128
        %v281 = vadd.s32 %v264, 136
        %v282 = vadd.s32 %v264, 144
        %v283 = vstv %s262
        %v284 = vadd.s32 %v283, %v264
        %v285 = vadd.s32 %v283, %v265
        %v286 = vadd.s32 %v283, %v266
        %v287 = vadd.s32 %v283, %v267
        %v288 = vadd.s32 %v283, %v268
        %v289 = vadd.s32 %v283, %v269
        %v290 = vadd.s32 %v283, %v270
        %v291 = vadd.s32 %v283, %v271
        %v292 = vadd.s32 %v283, %v272
        %v293 = vadd.s32 %v283, %v273
        %v294 = vadd.s32 %v283, %v274
        %v295 = vadd.s32 %v283, %v275
        %v296 = vadd.s32 %v283, %v276
        %v297 = vadd.s32 %v283, %v277
        %v298 = vadd.s32 %v283, %v278
        %v299 = vadd.s32 %v283, %v279
        %v300 = vadd.s32 %v283, %v280
        %v301 = vadd.s32 %v283, %v281
        %v302 = vadd.s32 %v283, %v282
        %vm303 = vcmp.lt.s32.totalorder %v284, 300
        %vm304 = vcmp.lt.s32.totalorder %v285, 300
        %vm305 = vcmp.lt.s32.totalorder %v286, 300
        %vm306 = vcmp.lt.s32.totalorder %v287, 300
        %vm307 = vcmp.lt.s32.totalorder %v288, 300
        %vm308 = vcmp.lt.s32.totalorder %v289, 300
        %vm309 = vcmp.lt.s32.totalorder %v290, 300
        %vm310 = vcmp.lt.s32.totalorder %v291, 300
        %vm311 = vcmp.lt.s32.totalorder %v292, 300
        %vm312 = vcmp.lt.s32.totalorder %v293, 300
        %vm313 = vcmp.lt.s32.totalorder %v294, 300
        %vm314 = vcmp.lt.s32.totalorder %v295, 300
        %vm315 = vcmp.lt.s32.totalorder %v296, 300
        %vm316 = vcmp.lt.s32.totalorder %v297, 300
        %vm317 = vcmp.lt.s32.totalorder %v298, 300
        %vm318 = vcmp.lt.s32.totalorder %v299, 300
        %vm319 = vcmp.lt.s32.totalorder %v300, 300
        %vm320 = vcmp.lt.s32.totalorder %v301, 300
        %vm321 = vcmp.lt.s32.totalorder %v302, 300
        %v322 = vmax.f32 %v186, %v187
        %v323 = vmax.f32 %v322, %v188
        %v324 = vmax.f32 %v323, %v189
        %325 = vmax.xlane.f32.xlu0 %v324
        %v326 = vpop.xlane.xlu0 %325
        %v327 = vmax.f32 %v190, %v191
        %v328 = vmax.f32 %v327, %v192
        %v329 = vmax.f32 %v328, %v193
        %330 = vmax.xlane.f32.xlu0 %v329
        %v331 = vpop.xlane.xlu0 %330
        %v332 = vmax.f32 %v194, %v195
        %v333 = vmax.f32 %v332, %v196
        %v334 = vmax.f32 %v333, %v197
        %335 = vmax.xlane.f32.xlu0 %v334
        %v336 = vpop.xlane.xlu0 %335
        %v337 = vmax.f32 %v198, %v199
        %v338 = vmax.f32 %v337, %v200
        %v339 = vmax.f32 %v338, %v201
        %340 = vmax.xlane.f32.xlu0 %v339
        %v341 = vpop.xlane.xlu0 %340
        %v342 = vmax.f32 %v202, %v203
        %v343 = vmax.f32 %v342, %v204
        %v344 = vmax.f32 %v343, %v205
        %345 = vmax.xlane.f32.xlu0 %v344
        %v346 = vpop.xlane.xlu0 %345
        %v347 = vmax.f32 %v206, %v207
        %v348 = vmax.f32 %v347, %v208
        %v349 = vmax.f32 %v348, %v209
        %350 = vmax.xlane.f32.xlu0 %v349
        %v351 = vpop.xlane.xlu0 %350
        %v352 = vmax.f32 %v210, %v211
        %v353 = vmax.f32 %v352, %v212
        %v354 = vmax.f32 %v353, %v213
        %355 = vmax.xlane.f32.xlu0 %v354
        %v356 = vpop.xlane.xlu0 %355
        %v357 = vmax.f32 %v214, %v215
        %v358 = vmax.f32 %v357, %v216
        %v359 = vmax.f32 %v358, %v217
        %360 = vmax.xlane.f32.xlu0 %v359
        %v361 = vpop.xlane.xlu0 %360
        %v362 = vmax.f32 %v218, %v219
        %v363 = vmax.f32 %v362, %v220
        %v364 = vmax.f32 %v363, %v221
        %365 = vmax.xlane.f32.xlu0 %v364
        %v366 = vpop.xlane.xlu0 %365
        %v367 = vmax.f32 %v222, %v223
        %v368 = vmax.f32 %v367, %v224
        %v369 = vmax.f32 %v368, %v225
        %370 = vmax.xlane.f32.xlu0 %v369
        %v371 = vpop.xlane.xlu0 %370
        %v372 = vmax.f32 %v226, %v227
        %v373 = vmax.f32 %v372, %v228
        %v374 = vmax.f32 %v373, %v229
        %375 = vmax.xlane.f32.xlu0 %v374
        %v376 = vpop.xlane.xlu0 %375
        %v377 = vmax.f32 %v230, %v231
        %v378 = vmax.f32 %v377, %v232
        %v379 = vmax.f32 %v378, %v233
        %380 = vmax.xlane.f32.xlu0 %v379
        %v381 = vpop.xlane.xlu0 %380
        %v382 = vmax.f32 %v234, %v235
        %v383 = vmax.f32 %v382, %v236
        %v384 = vmax.f32 %v383, %v237
        %385 = vmax.xlane.f32.xlu0 %v384
        %v386 = vpop.xlane.xlu0 %385
        %v387 = vmax.f32 %v238, %v239
        %v388 = vmax.f32 %v387, %v240
        %v389 = vmax.f32 %v388, %v241
        %390 = vmax.xlane.f32.xlu0 %v389
        %v391 = vpop.xlane.xlu0 %390
        %v392 = vmax.f32 %v242, %v243
        %v393 = vmax.f32 %v392, %v244
        %v394 = vmax.f32 %v393, %v245
        %395 = vmax.xlane.f32.xlu0 %v394
        %v396 = vpop.xlane.xlu0 %395
        %v397 = vmax.f32 %v246, %v247
        %v398 = vmax.f32 %v397, %v248
        %v399 = vmax.f32 %v398, %v249
        %400 = vmax.xlane.f32.xlu0 %v399
        %v401 = vpop.xlane.xlu0 %400
        %v402 = vmax.f32 %v250, %v251
        %v403 = vmax.f32 %v402, %v252
        %v404 = vmax.f32 %v403, %v253
        %405 = vmax.xlane.f32.xlu0 %v404
        %v406 = vpop.xlane.xlu0 %405
        %v407 = vmax.f32 %v254, %v255
        %v408 = vmax.f32 %v407, %v256
        %v409 = vmax.f32 %v408, %v257
        %410 = vmax.xlane.f32.xlu0 %v409
        %v411 = vpop.xlane.xlu0 %410
        %v412 = vmax.f32 %v258, %v259
        %v413 = vmax.f32 %v412, %v260
        %v414 = vmax.f32 %v413, %v261
        %415 = vmax.xlane.f32.xlu0 %v414
        %v416 = vpop.xlane.xlu0 %415
        %v417 = vsub.f32 %v186, %v326
        %v418 = vsub.f32 %v187, %v326
        %v419 = vsub.f32 %v188, %v326
        %v420 = vsub.f32 %v189, %v326
        %v421 = vsub.f32 %v190, %v331
        %v422 = vsub.f32 %v191, %v331
        %v423 = vsub.f32 %v192, %v331
        %v424 = vsub.f32 %v193, %v331
        %v425 = vsub.f32 %v194, %v336
        %v426 = vsub.f32 %v195, %v336
        %v427 = vsub.f32 %v196, %v336
        %v428 = vsub.f32 %v197, %v336
        %v429 = vsub.f32 %v198, %v341
        %v430 = vsub.f32 %v199, %v341
        %v431 = vsub.f32 %v200, %v341
        %v432 = vsub.f32 %v201, %v341
        %v433 = vsub.f32 %v202, %v346
        %v434 = vsub.f32 %v203, %v346
        %v435 = vsub.f32 %v204, %v346
        %v436 = vsub.f32 %v205, %v346
        %v437 = vsub.f32 %v206, %v351
        %v438 = vsub.f32 %v207, %v351
        %v439 = vsub.f32 %v208, %v351
        %v440 = vsub.f32 %v209, %v351
        %v441 = vsub.f32 %v210, %v356
        %v442 = vsub.f32 %v211, %v356
        %v443 = vsub.f32 %v212, %v356
        %v444 = vsub.f32 %v213, %v356
        %v445 = vsub.f32 %v214, %v361
        %v446 = vsub.f32 %v215, %v361
        %v447 = vsub.f32 %v216, %v361
        %v448 = vsub.f32 %v217, %v361
        %v449 = vsub.f32 %v218, %v366
        %v450 = vsub.f32 %v219, %v366
        %v451 = vsub.f32 %v220, %v366
        %v452 = vsub.f32 %v221, %v366
        %v453 = vsub.f32 %v222, %v371
        %v454 = vsub.f32 %v223, %v371
        %v455 = vsub.f32 %v224, %v371
        %v456 = vsub.f32 %v225, %v371
        %v457 = vsub.f32 %v226, %v376
        %v458 = vsub.f32 %v227, %v376
        %v459 = vsub.f32 %v228, %v376
        %v460 = vsub.f32 %v229, %v376
        %v461 = vsub.f32 %v230, %v381
        %v462 = vsub.f32 %v231, %v381
        %v463 = vsub.f32 %v232, %v381
        %v464 = vsub.f32 %v233, %v381
        %v465 = vsub.f32 %v234, %v386
        %v466 = vsub.f32 %v235, %v386
        %v467 = vsub.f32 %v236, %v386
        %v468 = vsub.f32 %v237, %v386
        %v469 = vsub.f32 %v238, %v391
        %v470 = vsub.f32 %v239, %v391
        %v471 = vsub.f32 %v240, %v391
        %v472 = vsub.f32 %v241, %v391
        %v473 = vsub.f32 %v242, %v396
        %v474 = vsub.f32 %v243, %v396
        %v475 = vsub.f32 %v244, %v396
        %v476 = vsub.f32 %v245, %v396
        %v477 = vsub.f32 %v246, %v401
        %v478 = vsub.f32 %v247, %v401
        %v479 = vsub.f32 %v248, %v401
        %v480 = vsub.f32 %v249, %v401
        %v481 = vsub.f32 %v250, %v406
        %v482 = vsub.f32 %v251, %v406
        %v483 = vsub.f32 %v252, %v406
        %v484 = vsub.f32 %v253, %v406
        %v485 = vsub.f32 %v254, %v411
        %v486 = vsub.f32 %v255, %v411
        %v487 = vsub.f32 %v256, %v411
        %v488 = vsub.f32 %v257, %v411
        %v489 = vsub.f32 %v258, %v416
        %v490 = vsub.f32 %v259, %v416
        %v491 = vsub.f32 %v260, %v416
        %v492 = vsub.f32 %v261, %v416
        %v493 = vmul.f32 %v417, 1.442695
        %v494 = vpow.pop %v493
        %v495 = vmul.f32 %v418, 1.442695
        %v496 = vpow.pop %v495
        %v497 = vmul.f32 %v419, 1.442695
        %v498 = vpow.pop %v497
        %v499 = vmul.f32 %v420, 1.442695
        %v500 = vpow.pop %v499
        %v501 = vmul.f32 %v421, 1.442695
        %v502 = vpow.pop %v501
        %v503 = vmul.f32 %v422, 1.442695
        %v504 = vpow.pop %v503
        %v505 = vmul.f32 %v423, 1.442695
        %v506 = vpow.pop %v505
        %v507 = vmul.f32 %v424, 1.442695
        %v508 = vpow.pop %v507
        %v509 = vmul.f32 %v425, 1.442695
        %v510 = vpow.pop %v509
        %v511 = vmul.f32 %v426, 1.442695
        %v512 = vpow.pop %v511
        %v513 = vmul.f32 %v427, 1.442695
        %v514 = vpow.pop %v513
        %v515 = vmul.f32 %v428, 1.442695
        %v516 = vpow.pop %v515
        %v517 = vmul.f32 %v429, 1.442695
        %v518 = vpow.pop %v517
        %v519 = vmul.f32 %v430, 1.442695
        %v520 = vpow.pop %v519
        %v521 = vmul.f32 %v431, 1.442695
        %v522 = vpow.pop %v521
        %v523 = vmul.f32 %v432, 1.442695
        %v524 = vpow.pop %v523
        %v525 = vmul.f32 %v433, 1.442695
        %v526 = vpow.pop %v525
        %v527 = vmul.f32 %v434, 1.442695
        %v528 = vpow.pop %v527
        %v529 = vmul.f32 %v435, 1.442695
        %v530 = vpow.pop %v529
        %v531 = vmul.f32 %v436, 1.442695
        %v532 = vpow.pop %v531
        %v533 = vmul.f32 %v437, 1.442695
        %v534 = vpow.pop %v533
        %v535 = vmul.f32 %v438, 1.442695
        %v536 = vpow.pop %v535
        %v537 = vmul.f32 %v439, 1.442695
        %v538 = vpow.pop %v537
        %v539 = vmul.f32 %v440, 1.442695
        %v540 = vpow.pop %v539
        %v541 = vmul.f32 %v441, 1.442695
        %v542 = vpow.pop %v541
        %v543 = vmul.f32 %v442, 1.442695
        %v544 = vpow.pop %v543
        %v545 = vmul.f32 %v443, 1.442695
        %v546 = vpow.pop %v545
        %v547 = vmul.f32 %v444, 1.442695
        %v548 = vpow.pop %v547
        %v549 = vmul.f32 %v445, 1.442695
        %v550 = vpow.pop %v549
        %v551 = vmul.f32 %v446, 1.442695
        %v552 = vpow.pop %v551
        %v553 = vmul.f32 %v447, 1.442695
        %v554 = vpow.pop %v553
        %v555 = vmul.f32 %v448, 1.442695
        %v556 = vpow.pop %v555
        %v557 = vmul.f32 %v449, 1.442695
        %v558 = vpow.pop %v557
        %v559 = vmul.f32 %v450, 1.442695
        %v560 = vpow.pop %v559
        %v561 = vmul.f32 %v451, 1.442695
        %v562 = vpow.pop %v561
        %v563 = vmul.f32 %v452, 1.442695
        %v564 = vpow.pop %v563
        %v565 = vmul.f32 %v453, 1.442695
        %v566 = vpow.pop %v565
        %v567 = vmul.f32 %v454, 1.442695
        %v568 = vpow.pop %v567
        %v569 = vmul.f32 %v455, 1.442695
        %v570 = vpow.pop %v569
        %v571 = vmul.f32 %v456, 1.442695
        %v572 = vpow.pop %v571
        %v573 = vmul.f32 %v457, 1.442695
        %v574 = vpow.pop %v573
        %v575 = vmul.f32 %v458, 1.442695
        %v576 = vpow.pop %v575
        %v577 = vmul.f32 %v459, 1.442695
        %v578 = vpow.pop %v577
        %v579 = vmul.f32 %v460, 1.442695
        %v580 = vpow.pop %v579
        %v581 = vmul.f32 %v461, 1.442695
        %v582 = vpow.pop %v581
        %v583 = vmul.f32 %v462, 1.442695
        %v584 = vpow.pop %v583
        %v585 = vmul.f32 %v463, 1.442695
        %v586 = vpow.pop %v585
        %v587 = vmul.f32 %v464, 1.442695
        %v588 = vpow.pop %v587
        %v589 = vmul.f32 %v465, 1.442695
        %v590 = vpow.pop %v589
        %v591 = vmul.f32 %v466, 1.442695
        %v592 = vpow.pop %v591
        %v593 = vmul.f32 %v467, 1.442695
        %v594 = vpow.pop %v593
        %v595 = vmul.f32 %v468, 1.442695
        %v596 = vpow.pop %v595
        %v597 = vmul.f32 %v469, 1.442695
        %v598 = vpow.pop %v597
        %v599 = vmul.f32 %v470, 1.442695
        %v600 = vpow.pop %v599
        %v601 = vmul.f32 %v471, 1.442695
        %v602 = vpow.pop %v601
        %v603 = vmul.f32 %v472, 1.442695
        %v604 = vpow.pop %v603
        %v605 = vmul.f32 %v473, 1.442695
        %v606 = vpow.pop %v605
        %v607 = vmul.f32 %v474, 1.442695
        %v608 = vpow.pop %v607
        %v609 = vmul.f32 %v475, 1.442695
        %v610 = vpow.pop %v609
        %v611 = vmul.f32 %v476, 1.442695
        %v612 = vpow.pop %v611
        %v613 = vmul.f32 %v477, 1.442695
        %v614 = vpow.pop %v613
        %v615 = vmul.f32 %v478, 1.442695
        %v616 = vpow.pop %v615
        %v617 = vmul.f32 %v479, 1.442695
        %v618 = vpow.pop %v617
        %v619 = vmul.f32 %v480, 1.442695
        %v620 = vpow.pop %v619
        %v621 = vmul.f32 %v481, 1.442695
        %v622 = vpow.pop %v621
        %v623 = vmul.f32 %v482, 1.442695
        %v624 = vpow.pop %v623
        %v625 = vmul.f32 %v483, 1.442695
        %v626 = vpow.pop %v625
        %v627 = vmul.f32 %v484, 1.442695
        %v628 = vpow.pop %v627
        %v629 = vmul.f32 %v485, 1.442695
        %v630 = vpow.pop %v629
        %v631 = vmul.f32 %v486, 1.442695
        %v632 = vpow.pop %v631
        %v633 = vmul.f32 %v487, 1.442695
        %v634 = vpow.pop %v633
        %v635 = vmul.f32 %v488, 1.442695
        %v636 = vpow.pop %v635
        %v637 = vmul.f32 %v489, 1.442695
        %v638 = vpow.pop %v637
        %v639 = vmul.f32 %v490, 1.442695
        %v640 = vpow.pop %v639
        %v641 = vmul.f32 %v491, 1.442695
        %v642 = vpow.pop %v641
        %v643 = vmul.f32 %v492, 1.442695
        %v644 = vpow.pop %v643
        %v645 = vadd.f32 %v494, %v496
        %v646 = vadd.f32 %v645, %v498
        %v647 = vadd.f32 %v646, %v500
        %648 = vadd.xlane.f32.xlu0 %v647
        %v649 = vpop.xlane.xlu0 %648
        %v650 = vadd.f32 %v502, %v504
        %v651 = vadd.f32 %v650, %v506
        %v652 = vadd.f32 %v651, %v508
        %653 = vadd.xlane.f32.xlu0 %v652
        %v654 = vpop.xlane.xlu0 %653
        %v655 = vadd.f32 %v510, %v512
        %v656 = vadd.f32 %v655, %v514
        %v657 = vadd.f32 %v656, %v516
        %658 = vadd.xlane.f32.xlu0 %v657
        %v659 = vpop.xlane.xlu0 %658
        %v660 = vadd.f32 %v518, %v520
        %v661 = vadd.f32 %v660, %v522
        %v662 = vadd.f32 %v661, %v524
        %663 = vadd.xlane.f32.xlu0 %v662
        %v664 = vpop.xlane.xlu0 %663
        %v665 = vadd.f32 %v526, %v528
        %v666 = vadd.f32 %v665, %v530
        %v667 = vadd.f32 %v666, %v532
        %668 = vadd.xlane.f32.xlu0 %v667
        %v669 = vpop.xlane.xlu0 %668
        %v670 = vadd.f32 %v534, %v536
        %v671 = vadd.f32 %v670, %v538
        %v672 = vadd.f32 %v671, %v540
        %673 = vadd.xlane.f32.xlu0 %v672
        %v674 = vpop.xlane.xlu0 %673
        %v675 = vadd.f32 %v542, %v544
        %v676 = vadd.f32 %v675, %v546
        %v677 = vadd.f32 %v676, %v548
        %678 = vadd.xlane.f32.xlu0 %v677
        %v679 = vpop.xlane.xlu0 %678
        %v680 = vadd.f32 %v550, %v552
        %v681 = vadd.f32 %v680, %v554
        %v682 = vadd.f32 %v681, %v556
        %683 = vadd.xlane.f32.xlu0 %v682
        %v684 = vpop.xlane.xlu0 %683
        %v685 = vadd.f32 %v558, %v560
        %v686 = vadd.f32 %v685, %v562
        %v687 = vadd.f32 %v686, %v564
        %688 = vadd.xlane.f32.xlu0 %v687
        %v689 = vpop.xlane.xlu0 %688
        %v690 = vadd.f32 %v566, %v568
        %v691 = vadd.f32 %v690, %v570
        %v692 = vadd.f32 %v691, %v572
        %693 = vadd.xlane.f32.xlu0 %v692
        %v694 = vpop.xlane.xlu0 %693
        %v695 = vadd.f32 %v574, %v576
        %v696 = vadd.f32 %v695, %v578
        %v697 = vadd.f32 %v696, %v580
        %698 = vadd.xlane.f32.xlu0 %v697
        %v699 = vpop.xlane.xlu0 %698
        %v700 = vadd.f32 %v582, %v584
        %v701 = vadd.f32 %v700, %v586
        %v702 = vadd.f32 %v701, %v588
        %703 = vadd.xlane.f32.xlu0 %v702
        %v704 = vpop.xlane.xlu0 %703
        %v705 = vadd.f32 %v590, %v592
        %v706 = vadd.f32 %v705, %v594
        %v707 = vadd.f32 %v706, %v596
        %708 = vadd.xlane.f32.xlu0 %v707
        %v709 = vpop.xlane.xlu0 %708
        %v710 = vadd.f32 %v598, %v600
        %v711 = vadd.f32 %v710, %v602
        %v712 = vadd.f32 %v711, %v604
        %713 = vadd.xlane.f32.xlu0 %v712
        %v714 = vpop.xlane.xlu0 %713
        %v715 = vadd.f32 %v606, %v608
        %v716 = vadd.f32 %v715, %v610
        %v717 = vadd.f32 %v716, %v612
        %718 = vadd.xlane.f32.xlu0 %v717
        %v719 = vpop.xlane.xlu0 %718
        %v720 = vadd.f32 %v614, %v616
        %v721 = vadd.f32 %v720, %v618
        %v722 = vadd.f32 %v721, %v620
        %723 = vadd.xlane.f32.xlu0 %v722
        %v724 = vpop.xlane.xlu0 %723
        %v725 = vadd.f32 %v622, %v624
        %v726 = vadd.f32 %v725, %v626
        %v727 = vadd.f32 %v726, %v628
        %728 = vadd.xlane.f32.xlu0 %v727
        %v729 = vpop.xlane.xlu0 %728
        %v730 = vadd.f32 %v630, %v632
        %v731 = vadd.f32 %v730, %v634
        %v732 = vadd.f32 %v731, %v636
        %733 = vadd.xlane.f32.xlu0 %v732
        %v734 = vpop.xlane.xlu0 %733
        %v735 = vadd.f32 %v638, %v640
        %v736 = vadd.f32 %v735, %v642
        %v737 = vadd.f32 %v736, %v644
        %738 = vadd.xlane.f32.xlu0 %v737
        %v739 = vpop.xlane.xlu0 %738
        %v740 = vlaneseq
        %v741 = vand.u32 %v740, 127
        %v742 = vadd.s32 %v741, 128
        %v743 = vadd.s32 %v741, 256
        %v744 = vadd.s32 %v741, 384
        %v745 = vld [vmem:[%s180] sm:$0xff]
        %v746 = vld [vmem:[%s180 + $0x8] sm:$0xff]
        %v747 = vld [vmem:[%s180 + $0x10] sm:$0xff]
        %v748 = vld [vmem:[%s180 + $0x18] sm:$0xff]
        %v749 = vld [vmem:[%s180 + $0x20] sm:$0xff]
        %v750 = vld [vmem:[%s180 + $0x28] sm:$0xff]
        %v751 = vld [vmem:[%s180 + $0x30] sm:$0xff]
        %v752 = vld [vmem:[%s180 + $0x38] sm:$0xff]
        %v753 = vld [vmem:[%s180 + $0x40] sm:$0xff]
        %v754 = vld [vmem:[%s180 + $0x48] sm:$0xff]
        %v755 = vld [vmem:[%s180 + $0x50] sm:$0xff]
        %v756 = vld [vmem:[%s180 + $0x58] sm:$0xff]
        %v757 = vld [vmem:[%s180 + $0x60] sm:$0xff]
        %v758 = vld [vmem:[%s180 + $0x68] sm:$0xff]
        %v759 = vld [vmem:[%s180 + $0x70] sm:$0xff]
        %v760 = vld [vmem:[%s180 + $0x78] sm:$0xff]
        %v761 = vld [vmem:[%s180 + $0x80] sm:$0xff]
        %v762 = vld [vmem:[%s180 + $0x88] sm:$0xff]
        %v763 = vld [vmem:[%s180 + $0x90] sm:$0xff]
        %764 = vset.pattern.permute.xlu0 0
        %765 = vperm.xlu0 %764, %v745
        %v766 = vpop.permute.xlu0 %765
        %767 = vset.pattern.permute.xlu0 0
        %768 = vperm.xlu0 %767, %v746
        %v769 = vpop.permute.xlu0 %768
        %770 = vset.pattern.permute.xlu0 0
        %771 = vperm.xlu0 %770, %v747
        %v772 = vpop.permute.xlu0 %771
        %773 = vset.pattern.permute.xlu0 0
        %774 = vperm.xlu0 %773, %v748
        %v775 = vpop.permute.xlu0 %774
        %776 = vset.pattern.permute.xlu0 0
        %777 = vperm.xlu0 %776, %v749
        %v778 = vpop.permute.xlu0 %777
        %779 = vset.pattern.permute.xlu0 0
        %780 = vperm.xlu0 %779, %v750
        %v781 = vpop.permute.xlu0 %780
        %782 = vset.pattern.permute.xlu0 0
        %783 = vperm.xlu0 %782, %v751
        %v784 = vpop.permute.xlu0 %783
        %785 = vset.pattern.permute.xlu0 0
        %786 = vperm.xlu0 %785, %v752
        %v787 = vpop.permute.xlu0 %786
        %788 = vset.pattern.permute.xlu0 0
        %789 = vperm.xlu0 %788, %v753
        %v790 = vpop.permute.xlu0 %789
        %791 = vset.pattern.permute.xlu0 0
        %792 = vperm.xlu0 %791, %v754
        %v793 = vpop.permute.xlu0 %792
        %794 = vset.pattern.permute.xlu0 0
        %795 = vperm.xlu0 %794, %v755
        %v796 = vpop.permute.xlu0 %795
        %797 = vset.pattern.permute.xlu0 0
        %798 = vperm.xlu0 %797, %v756
        %v799 = vpop.permute.xlu0 %798
        %800 = vset.pattern.permute.xlu0 0
        %801 = vperm.xlu0 %800, %v757
        %v802 = vpop.permute.xlu0 %801
        %803 = vset.pattern.permute.xlu0 0
        %804 = vperm.xlu0 %803, %v758
        %v805 = vpop.permute.xlu0 %804
        %806 = vset.pattern.permute.xlu0 0
        %807 = vperm.xlu0 %806, %v759
        %v808 = vpop.permute.xlu0 %807
        %809 = vset.pattern.permute.xlu0 0
        %810 = vperm.xlu0 %809, %v760
        %v811 = vpop.permute.xlu0 %810
        %812 = vset.pattern.permute.xlu0 0
        %813 = vperm.xlu0 %812, %v761
        %v814 = vpop.permute.xlu0 %813
        %815 = vset.pattern.permute.xlu0 0
        %816 = vperm.xlu0 %815, %v762
        %v817 = vpop.permute.xlu0 %816
        %818 = vset.pattern.permute.xlu0 0
        %819 = vperm.xlu0 %818, %v763
        %v820 = vpop.permute.xlu0 %819
        %vm821 = vcmp.eq.s32.totalorder %v741, %v766
        %vm822 = vcmp.eq.s32.totalorder %v742, %v766
        %vm823 = vcmp.eq.s32.totalorder %v743, %v766
        %vm824 = vcmp.eq.s32.totalorder %v744, %v766
        %vm825 = vcmp.eq.s32.totalorder %v741, %v769
        %vm826 = vcmp.eq.s32.totalorder %v742, %v769
        %vm827 = vcmp.eq.s32.totalorder %v743, %v769
        %vm828 = vcmp.eq.s32.totalorder %v744, %v769
        %vm829 = vcmp.eq.s32.totalorder %v741, %v772
        %vm830 = vcmp.eq.s32.totalorder %v742, %v772
        %vm831 = vcmp.eq.s32.totalorder %v743, %v772
        %vm832 = vcmp.eq.s32.totalorder %v744, %v772
        %vm833 = vcmp.eq.s32.totalorder %v741, %v775
        %vm834 = vcmp.eq.s32.totalorder %v742, %v775
        %vm835 = vcmp.eq.s32.totalorder %v743, %v775
        %vm836 = vcmp.eq.s32.totalorder %v744, %v775
        %vm837 = vcmp.eq.s32.totalorder %v741, %v778
        %vm838 = vcmp.eq.s32.totalorder %v742, %v778
        %vm839 = vcmp.eq.s32.totalorder %v743, %v778
        %vm840 = vcmp.eq.s32.totalorder %v744, %v778
        %vm841 = vcmp.eq.s32.totalorder %v741, %v781
        %vm842 = vcmp.eq.s32.totalorder %v742, %v781
        %vm843 = vcmp.eq.s32.totalorder %v743, %v781
        %vm844 = vcmp.eq.s32.totalorder %v744, %v781
        %vm845 = vcmp.eq.s32.totalorder %v741, %v784
        %vm846 = vcmp.eq.s32.totalorder %v742, %v784
        %vm847 = vcmp.eq.s32.totalorder %v743, %v784
        %vm848 = vcmp.eq.s32.totalorder %v744, %v784
        %vm849 = vcmp.eq.s32.totalorder %v741, %v787
        %vm850 = vcmp.eq.s32.totalorder %v742, %v787
        %vm851 = vcmp.eq.s32.totalorder %v743, %v787
        %vm852 = vcmp.eq.s32.totalorder %v744, %v787
        %vm853 = vcmp.eq.s32.totalorder %v741, %v790
        %vm854 = vcmp.eq.s32.totalorder %v742, %v790
        %vm855 = vcmp.eq.s32.totalorder %v743, %v790
        %vm856 = vcmp.eq.s32.totalorder %v744, %v790
        %vm857 = vcmp.eq.s32.totalorder %v741, %v793
        %vm858 = vcmp.eq.s32.totalorder %v742, %v793
        %vm859 = vcmp.eq.s32.totalorder %v743, %v793
        %vm860 = vcmp.eq.s32.totalorder %v744, %v793
        %vm861 = vcmp.eq.s32.totalorder %v741, %v796
        %vm862 = vcmp.eq.s32.totalorder %v742, %v796
        %vm863 = vcmp.eq.s32.totalorder %v743, %v796
        %vm864 = vcmp.eq.s32.totalorder %v744, %v796
        %vm865 = vcmp.eq.s32.totalorder %v741, %v799
        %vm866 = vcmp.eq.s32.totalorder %v742, %v799
        %vm867 = vcmp.eq.s32.totalorder %v743, %v799
        %vm868 = vcmp.eq.s32.totalorder %v744, %v799
        %vm869 = vcmp.eq.s32.totalorder %v741, %v802
        %vm870 = vcmp.eq.s32.totalorder %v742, %v802
        %vm871 = vcmp.eq.s32.totalorder %v743, %v802
        %vm872 = vcmp.eq.s32.totalorder %v744, %v802
        %vm873 = vcmp.eq.s32.totalorder %v741, %v805
        %vm874 = vcmp.eq.s32.totalorder %v742, %v805
        %vm875 = vcmp.eq.s32.totalorder %v743, %v805
        %vm876 = vcmp.eq.s32.totalorder %v744, %v805
        %vm877 = vcmp.eq.s32.totalorder %v741, %v808
        %vm878 = vcmp.eq.s32.totalorder %v742, %v808
        %vm879 = vcmp.eq.s32.totalorder %v743, %v808
        %vm880 = vcmp.eq.s32.totalorder %v744, %v808
        %vm881 = vcmp.eq.s32.totalorder %v741, %v811
        %vm882 = vcmp.eq.s32.totalorder %v742, %v811
        %vm883 = vcmp.eq.s32.totalorder %v743, %v811
        %vm884 = vcmp.eq.s32.totalorder %v744, %v811
        %vm885 = vcmp.eq.s32.totalorder %v741, %v814
        %vm886 = vcmp.eq.s32.totalorder %v742, %v814
        %vm887 = vcmp.eq.s32.totalorder %v743, %v814
        %vm888 = vcmp.eq.s32.totalorder %v744, %v814
        %vm889 = vcmp.eq.s32.totalorder %v741, %v817
        %vm890 = vcmp.eq.s32.totalorder %v742, %v817
        %vm891 = vcmp.eq.s32.totalorder %v743, %v817
        %vm892 = vcmp.eq.s32.totalorder %v744, %v817
        %vm893 = vcmp.eq.s32.totalorder %v741, %v820
        %vm894 = vcmp.eq.s32.totalorder %v742, %v820
        %vm895 = vcmp.eq.s32.totalorder %v743, %v820
        %vm896 = vcmp.eq.s32.totalorder %v744, %v820
        %v897 = vsel %vm821, %v417, 0.0
        %v898 = vsel %vm822, %v418, 0.0
        %v899 = vsel %vm823, %v419, 0.0
        %v900 = vsel %vm824, %v420, 0.0
        %v901 = vsel %vm825, %v421, 0.0
        %v902 = vsel %vm826, %v422, 0.0
        %v903 = vsel %vm827, %v423, 0.0
        %v904 = vsel %vm828, %v424, 0.0
        %v905 = vsel %vm829, %v425, 0.0
        %v906 = vsel %vm830, %v426, 0.0
        %v907 = vsel %vm831, %v427, 0.0
        %v908 = vsel %vm832, %v428, 0.0
        %v909 = vsel %vm833, %v429, 0.0
        %v910 = vsel %vm834, %v430, 0.0
        %v911 = vsel %vm835, %v431, 0.0
        %v912 = vsel %vm836, %v432, 0.0
        %v913 = vsel %vm837, %v433, 0.0
        %v914 = vsel %vm838, %v434, 0.0
        %v915 = vsel %vm839, %v435, 0.0
        %v916 = vsel %vm840, %v436, 0.0
        %v917 = vsel %vm841, %v437, 0.0
        %v918 = vsel %vm842, %v438, 0.0
        %v919 = vsel %vm843, %v439, 0.0
        %v920 = vsel %vm844, %v440, 0.0
        %v921 = vsel %vm845, %v441, 0.0
        %v922 = vsel %vm846, %v442, 0.0
        %v923 = vsel %vm847, %v443, 0.0
        %v924 = vsel %vm848, %v444, 0.0
        %v925 = vsel %vm849, %v445, 0.0
        %v926 = vsel %vm850, %v446, 0.0
        %v927 = vsel %vm851, %v447, 0.0
        %v928 = vsel %vm852, %v448, 0.0
        %v929 = vsel %vm853, %v449, 0.0
        %v930 = vsel %vm854, %v450, 0.0
        %v931 = vsel %vm855, %v451, 0.0
        %v932 = vsel %vm856, %v452, 0.0
        %v933 = vsel %vm857, %v453, 0.0
        %v934 = vsel %vm858, %v454, 0.0
        %v935 = vsel %vm859, %v455, 0.0
        %v936 = vsel %vm860, %v456, 0.0
        %v937 = vsel %vm861, %v457, 0.0
        %v938 = vsel %vm862, %v458, 0.0
        %v939 = vsel %vm863, %v459, 0.0
        %v940 = vsel %vm864, %v460, 0.0
        %v941 = vsel %vm865, %v461, 0.0
        %v942 = vsel %vm866, %v462, 0.0
        %v943 = vsel %vm867, %v463, 0.0
        %v944 = vsel %vm868, %v464, 0.0
        %v945 = vsel %vm869, %v465, 0.0
        %v946 = vsel %vm870, %v466, 0.0
        %v947 = vsel %vm871, %v467, 0.0
        %v948 = vsel %vm872, %v468, 0.0
        %v949 = vsel %vm873, %v469, 0.0
        %v950 = vsel %vm874, %v470, 0.0
        %v951 = vsel %vm875, %v471, 0.0
        %v952 = vsel %vm876, %v472, 0.0
        %v953 = vsel %vm877, %v473, 0.0
        %v954 = vsel %vm878, %v474, 0.0
        %v955 = vsel %vm879, %v475, 0.0
        %v956 = vsel %vm880, %v476, 0.0
        %v957 = vsel %vm881, %v477, 0.0
        %v958 = vsel %vm882, %v478, 0.0
        %v959 = vsel %vm883, %v479, 0.0
        %v960 = vsel %vm884, %v480, 0.0
        %v961 = vsel %vm885, %v481, 0.0
        %v962 = vsel %vm886, %v482, 0.0
        %v963 = vsel %vm887, %v483, 0.0
        %v964 = vsel %vm888, %v484, 0.0
        %v965 = vsel %vm889, %v485, 0.0
        %v966 = vsel %vm890, %v486, 0.0
        %v967 = vsel %vm891, %v487, 0.0
        %v968 = vsel %vm892, %v488, 0.0
        %v969 = vsel %vm893, %v489, 0.0
        %v970 = vsel %vm894, %v490, 0.0
        %v971 = vsel %vm895, %v491, 0.0
        %v972 = vsel %vm896, %v492, 0.0
        %v973 = vadd.f32 %v897, %v898
        %v974 = vadd.f32 %v973, %v899
        %v975 = vadd.f32 %v974, %v900
        %976 = vadd.xlane.f32.xlu0 %v975
        %v977 = vpop.xlane.xlu0 %976
        %v978 = vadd.f32 %v901, %v902
        %v979 = vadd.f32 %v978, %v903
        %v980 = vadd.f32 %v979, %v904
        %981 = vadd.xlane.f32.xlu0 %v980
        %v982 = vpop.xlane.xlu0 %981
        %v983 = vadd.f32 %v905, %v906
        %v984 = vadd.f32 %v983, %v907
        %v985 = vadd.f32 %v984, %v908
        %986 = vadd.xlane.f32.xlu0 %v985
        %v987 = vpop.xlane.xlu0 %986
        %v988 = vadd.f32 %v909, %v910
        %v989 = vadd.f32 %v988, %v911
        %v990 = vadd.f32 %v989, %v912
        %991 = vadd.xlane.f32.xlu0 %v990
        %v992 = vpop.xlane.xlu0 %991
        %v993 = vadd.f32 %v913, %v914
        %v994 = vadd.f32 %v993, %v915
        %v995 = vadd.f32 %v994, %v916
        %996 = vadd.xlane.f32.xlu0 %v995
        %v997 = vpop.xlane.xlu0 %996
        %v998 = vadd.f32 %v917, %v918
        %v999 = vadd.f32 %v998, %v919
        %v1000 = vadd.f32 %v999, %v920
        %1001 = vadd.xlane.f32.xlu0 %v1000
        %v1002 = vpop.xlane.xlu0 %1001
        %v1003 = vadd.f32 %v921, %v922
        %v1004 = vadd.f32 %v1003, %v923
        %v1005 = vadd.f32 %v1004, %v924
        %1006 = vadd.xlane.f32.xlu0 %v1005
        %v1007 = vpop.xlane.xlu0 %1006
        %v1008 = vadd.f32 %v925, %v926
        %v1009 = vadd.f32 %v1008, %v927
        %v1010 = vadd.f32 %v1009, %v928
        %1011 = vadd.xlane.f32.xlu0 %v1010
        %v1012 = vpop.xlane.xlu0 %1011
        %v1013 = vadd.f32 %v929, %v930
        %v1014 = vadd.f32 %v1013, %v931
        %v1015 = vadd.f32 %v1014, %v932
        %1016 = vadd.xlane.f32.xlu0 %v1015
        %v1017 = vpop.xlane.xlu0 %1016
        %v1018 = vadd.f32 %v933, %v934
        %v1019 = vadd.f32 %v1018, %v935
        %v1020 = vadd.f32 %v1019, %v936
        %1021 = vadd.xlane.f32.xlu0 %v1020
        %v1022 = vpop.xlane.xlu0 %1021
        %v1023 = vadd.f32 %v937, %v938
        %v1024 = vadd.f32 %v1023, %v939
        %v1025 = vadd.f32 %v1024, %v940
        %1026 = vadd.xlane.f32.xlu0 %v1025
        %v1027 = vpop.xlane.xlu0 %1026
        %v1028 = vadd.f32 %v941, %v942
        %v1029 = vadd.f32 %v1028, %v943
        %v1030 = vadd.f32 %v1029, %v944
        %1031 = vadd.xlane.f32.xlu0 %v1030
        %v1032 = vpop.xlane.xlu0 %1031
        %v1033 = vadd.f32 %v945, %v946
        %v1034 = vadd.f32 %v1033, %v947
        %v1035 = vadd.f32 %v1034, %v948
        %1036 = vadd.xlane.f32.xlu0 %v1035
        %v1037 = vpop.xlane.xlu0 %1036
        %v1038 = vadd.f32 %v949, %v950
        %v1039 = vadd.f32 %v1038, %v951
        %v1040 = vadd.f32 %v1039, %v952
        %1041 = vadd.xlane.f32.xlu0 %v1040
        %v1042 = vpop.xlane.xlu0 %1041
        %v1043 = vadd.f32 %v953, %v954
        %v1044 = vadd.f32 %v1043, %v955
        %v1045 = vadd.f32 %v1044, %v956
        %1046 = vadd.xlane.f32.xlu0 %v1045
        %v1047 = vpop.xlane.xlu0 %1046
        %v1048 = vadd.f32 %v957, %v958
        %v1049 = vadd.f32 %v1048, %v959
        %v1050 = vadd.f32 %v1049, %v960
        %1051 = vadd.xlane.f32.xlu0 %v1050
        %v1052 = vpop.xlane.xlu0 %1051
        %v1053 = vadd.f32 %v961, %v962
        %v1054 = vadd.f32 %v1053, %v963
        %v1055 = vadd.f32 %v1054, %v964
        %1056 = vadd.xlane.f32.xlu0 %v1055
        %v1057 = vpop.xlane.xlu0 %1056
        %v1058 = vadd.f32 %v965, %v966
        %v1059 = vadd.f32 %v1058, %v967
        %v1060 = vadd.f32 %v1059, %v968
        %1061 = vadd.xlane.f32.xlu0 %v1060
        %v1062 = vpop.xlane.xlu0 %1061
        %v1063 = vadd.f32 %v969, %v970
        %v1064 = vadd.f32 %v1063, %v971
        %v1065 = vadd.f32 %v1064, %v972
        %1066 = vadd.xlane.f32.xlu0 %v1065
        %v1067 = vpop.xlane.xlu0 %1066
        %v1068 = vlog2.pop %v649
        %v1069 = vmul.f32 %v1068, 0.6931472
        %v1070 = vlog2.pop %v654
        %v1071 = vmul.f32 %v1070, 0.6931472
        %v1072 = vlog2.pop %v659
        %v1073 = vmul.f32 %v1072, 0.6931472
        %v1074 = vlog2.pop %v664
        %v1075 = vmul.f32 %v1074, 0.6931472
        %v1076 = vlog2.pop %v669
        %v1077 = vmul.f32 %v1076, 0.6931472
        %v1078 = vlog2.pop %v674
        %v1079 = vmul.f32 %v1078, 0.6931472
        %v1080 = vlog2.pop %v679
        %v1081 = vmul.f32 %v1080, 0.6931472
        %v1082 = vlog2.pop %v684
        %v1083 = vmul.f32 %v1082, 0.6931472
        %v1084 = vlog2.pop %v689
        %v1085 = vmul.f32 %v1084, 0.6931472
        %v1086 = vlog2.pop %v694
        %v1087 = vmul.f32 %v1086, 0.6931472
        %v1088 = vlog2.pop %v699
        %v1089 = vmul.f32 %v1088, 0.6931472
        %v1090 = vlog2.pop %v704
        %v1091 = vmul.f32 %v1090, 0.6931472
        %v1092 = vlog2.pop %v709
        %v1093 = vmul.f32 %v1092, 0.6931472
        %v1094 = vlog2.pop %v714
        %v1095 = vmul.f32 %v1094, 0.6931472
        %v1096 = vlog2.pop %v719
        %v1097 = vmul.f32 %v1096, 0.6931472
        %v1098 = vlog2.pop %v724
        %v1099 = vmul.f32 %v1098, 0.6931472
        %v1100 = vlog2.pop %v729
        %v1101 = vmul.f32 %v1100, 0.6931472
        %v1102 = vlog2.pop %v734
        %v1103 = vmul.f32 %v1102, 0.6931472
        %v1104 = vlog2.pop %v739
        %v1105 = vmul.f32 %v1104, 0.6931472
        %v1106 = vsub.f32 %v1069, %v977
        %v1107 = vsub.f32 %v1071, %v982
        %v1108 = vsub.f32 %v1073, %v987
        %v1109 = vsub.f32 %v1075, %v992
        %v1110 = vsub.f32 %v1077, %v997
        %v1111 = vsub.f32 %v1079, %v1002
        %v1112 = vsub.f32 %v1081, %v1007
        %v1113 = vsub.f32 %v1083, %v1012
        %v1114 = vsub.f32 %v1085, %v1017
        %v1115 = vsub.f32 %v1087, %v1022
        %v1116 = vsub.f32 %v1089, %v1027
        %v1117 = vsub.f32 %v1091, %v1032
        %v1118 = vsub.f32 %v1093, %v1037
        %v1119 = vsub.f32 %v1095, %v1042
        %v1120 = vsub.f32 %v1097, %v1047
        %v1121 = vsub.f32 %v1099, %v1052
        %v1122 = vsub.f32 %v1101, %v1057
        %v1123 = vsub.f32 %v1103, %v1062
        %v1124 = vsub.f32 %v1105, %v1067
        %v1125 = vsel %vm303, %v1106, 0.0
        %v1126 = vsel %vm304, %v1107, 0.0
        %v1127 = vsel %vm305, %v1108, 0.0
        %v1128 = vsel %vm306, %v1109, 0.0
        %v1129 = vsel %vm307, %v1110, 0.0
        %v1130 = vsel %vm308, %v1111, 0.0
        %v1131 = vsel %vm309, %v1112, 0.0
        %v1132 = vsel %vm310, %v1113, 0.0
        %v1133 = vsel %vm311, %v1114, 0.0
        %v1134 = vsel %vm312, %v1115, 0.0
        %v1135 = vsel %vm313, %v1116, 0.0
        %v1136 = vsel %vm314, %v1117, 0.0
        %v1137 = vsel %vm315, %v1118, 0.0
        %v1138 = vsel %vm316, %v1119, 0.0
        %v1139 = vsel %vm317, %v1120, 0.0
        %v1140 = vsel %vm318, %v1121, 0.0
        %v1141 = vsel %vm319, %v1122, 0.0
        %v1142 = vsel %vm320, %v1123, 0.0
        %v1143 = vsel %vm321, %v1124, 0.0
        %vm1144 = vcmp.eq.s32.totalorder %v264, 0
        %v1145 = vsel %vm1144, 1, 0
        %v1146 = vcvt.s32.f32 %v1145
        %vm1148 = vcmask 195584
        %v1149 = vsel %vm1148, %v1146, 0
        %1151 = vmatprep.subr.mxu0 0.0
        %1152 = vmatpush1.msra.mxu0 %v1140
        %1153 = vmatprep.subr.mxu0 0.0
        %1154 = vmatpush1.msra.mxu0 %v1139
        %1155 = vmatprep.subr.mxu0 0.0
        %1156 = vmatpush1.msra.mxu0 %v1138
        %1157 = vmatprep.subr.mxu0 0.0
        %1158 = vmatpush1.msra.mxu0 %v1137
        %1159 = vmatprep.subr.mxu0 0.0
        %1160 = vmatpush1.msra.mxu0 %v1136
        %1161 = vmatprep.subr.mxu0 0.0
        %1162 = vmatpush1.msra.mxu0 %v1135
        %1163 = vmatprep.subr.mxu0 0.0
        %1164 = vmatpush1.msra.mxu0 %v1134
        %1165 = vmatprep.subr.mxu0 0.0
        %1166 = vmatpush1.msra.mxu0 %v1133
        %1167 = vmatprep.subr.mxu0 0.0
        %1168 = vmatpush1.msra.mxu0 %v1132
        %1169 = vmatprep.subr.mxu0 0.0
        %1170 = vmatpush1.msra.mxu0 %v1131
        %1171 = vmatprep.subr.mxu0 0.0
        %1172 = vmatpush1.msra.mxu0 %v1130
        %1173 = vmatprep.subr.mxu0 0.0
        %1174 = vmatpush1.msra.mxu0 %v1129
        %1175 = vmatprep.subr.mxu0 0.0
        %1176 = vmatpush1.msra.mxu0 %v1128
        %1177 = vmatprep.subr.mxu0 0.0
        %1178 = vmatpush1.msra.mxu0 %v1127
        %1179 = vmatprep.subr.mxu0 0.0
        %1180 = vmatpush1.msra.mxu0 %v1126
        %1181 = vmatprep.subr.mxu0 0.0
        %1182 = vmatpush1.msra.mxu0 %v1125
        %1183 = vmatprep.subr.mxu0 0.0
        %1184 = vmatpush2.msra.mxu0 0.0
        %1185 = vmatprep.subr.mxu0 0.0
        %1186 = vmatpush2.msra.mxu0 0.0
        %1187 = vmatprep.subr.mxu0 0.0
        %1188 = vmatpush2.msra.mxu0 0.0
        %1189 = vmatprep.subr.mxu0 0.0
        %1190 = vmatpush2.msra.mxu0 0.0
        %1191 = vmatprep.subr.mxu0 0.0
        %1192 = vmatpush2.msra.mxu0 0.0
        %1193 = vmatprep.subr.mxu0 0.0
        %1194 = vmatpush2.msra.mxu0 0.0
        %1195 = vmatprep.subr.mxu0 0.0
        %1196 = vmatpush2.msra.mxu0 0.0
        %1197 = vmatprep.subr.mxu0 0.0
        %1198 = vmatpush2.msra.mxu0 0.0
        %1199 = vmatprep.subr.mxu0 0.0
        %1200 = vmatpush2.msra.mxu0 0.0
        %1201 = vmatprep.subr.mxu0 0.0
        %1202 = vmatpush2.msra.mxu0 0.0
        %1203 = vmatprep.subr.mxu0 0.0
        %1204 = vmatpush2.msra.mxu0 0.0
        %1205 = vmatprep.subr.mxu0 0.0
        %1206 = vmatpush2.msra.mxu0 0.0
        %1207 = vmatprep.subr.mxu0 0.0
        %1208 = vmatpush2.msra.mxu0 0.0
        %1209 = vmatprep.subr.mxu0 0.0
        %1210 = vmatpush2.msra.mxu0 %v1143
        %1211 = vmatprep.subr.mxu0 0.0
        %1212 = vmatpush2.msra.mxu0 %v1142
        %1213 = vmatprep.subr.mxu0 0.0
        %1214 = vmatpush2.msra.mxu0 %v1141
        %1215 = vmatprep.mubr.f32.mxu0 %v1149
        %1216 = vmatmul.mubr.f32.gmra.mxu0 %v1146
        %v1217 = vpop.f32.mrf.mxu0
        %v1218 = vadd.f32 0.0, %v1217
        %v1219 = vpop.f32.mrf.mxu0
        %1220 = vdwg.mxu0
        %vm1221 = vcmask 7168
        %1222 = vst.msk [vmem:[%s185] sm:$0xff] %vm1221, %v1218
        %p1223 = scmp.lt.s32.totalorder %s16, 1
        %s1224 = scalar_select %p1223, %s16, 1
        %s1225 = smul.addr %s1224, 8
        %s1226 = scalar_lea.vmem %s2, %s1225
        // Predicated region
        $region33: #{_ce_sum_pallas.1} parent=27 // pred_check
          %p1227 = pneg %p86
        $region34: #{_ce_sum_pallas.1} parent=27 // pred_check_branch
          %1229 = sbr.rel (%p1227) target = $region36
        $region35: #{_ce_sum_pallas.1} parent=27 // pred_region
          _
        $region36: #{_ce_sum_pallas.1} parent=27 // pred_fallthru
          _
      $region28: #{_ce_sum_pallas.1} parent=5 // pred_fallthru
        _
      %p1230 = scmp.le.s32.totalorder 2, %s11
      // Predicated region
      $region37: #{_ce_sum_pallas.1} parent=5 // pred_check
        %p1231 = pneg %p1230
      $region38: #{_ce_sum_pallas.1} parent=5 // pred_check_branch
        %1233 = sbr.rel (%p1231) target = $region40
      $region39: #{_ce_sum_pallas.1} parent=5 // pred_region
        %s1234 = ssub.s32 %s11, 2
        // Predicated region
        $region41: #{_ce_sum_pallas.1} parent=39 // pred_check
          %p1235 = pneg %p92
        $region42: #{_ce_sum_pallas.1} parent=39 // pred_check_branch
          %1237 = sbr.rel (%p1235) target = $region44
        $region43: #{_ce_sum_pallas.1} parent=39 // pred_region
          %p1238 = scmp.lt.s32.totalorder %s17, 1
          %s1239 = scalar_select %p1238, %s17, 1
          %s1240 = smul.addr %s1239, 8
          %s1241 = scalar_lea.vmem %s2, %s1240
        $region44: #{_ce_sum_pallas.1} parent=39 // pred_fallthru
          _
      $region40: #{_ce_sum_pallas.1} parent=5 // pred_fallthru
        _
    $region6: #{_ce_sum_pallas.1} parent=1 // loop_footer
      %s15 = sadd.s32 1, %s11
    $region7: #{_ce_sum_pallas.1} parent=1 // loop_footer_branch
      %10 = sbr.rel target = $region3
    $region8: #{_ce_sum_pallas.1} parent=1 // loop_exit
      _
    %1242 = vsyncpa [#allocation3], 1
    %s1243 = scalar_lea.sflag [#allocation3], 1
    %1244 = vsyncpa %s1243, 1

</llo_original>
